<compile_context>
chip_gen: v5e
topology: v5e:2x2
jax: 0.10.0
libtpu: 0.0.40
codegen_flags: <defaults>
</compile_context>

<pallas_src>
import functools

import jax
import jax.numpy as jnp
from jax import lax
from jax.experimental import pallas as pl
from jax.experimental.pallas import tpu as pltpu

# Plain Python float (NOT a jax/numpy array) so it is inlined as a literal and
# never captured as a kernel constant. Large-negative instead of -inf avoids
# inf - inf NaNs in the online-softmax rescale.
_NEG_LARGE = -1e30


def _zero_layer_kernel(emb_ref, wu_ref, tgt_ref, logits_ref, nll_ref,
                       m_sc, l_sc, t_sc, *, v_actual, v_pad, tv):
    j = pl.program_id(1)              # vocab-tile index (reduction axis, innermost)
    nj = pl.num_programs(1)

    @pl.when(j == 0)
    def _():
        m_sc[...] = jnp.full_like(m_sc, _NEG_LARGE)
        l_sc[...] = jnp.zeros_like(l_sc)
        t_sc[...] = jnp.zeros_like(t_sc)

    # Unembedding: [TN, D](bf16) x [TV, D](bf16) contracted over D -> [TN, TV] f32 acc.
    logits = lax.dot_general(
        emb_ref[...], wu_ref[...],
        dimension_numbers=(((1,), (1,)), ((), ())),
        preferred_element_type=jnp.float32)

    # bf16 store -> halves the dominant HBM stream (logits writeback).
    logits_ref[...] = logits.astype(jnp.bfloat16)

    # Target logit: compare in-tile column index against (tgt - j*TV).
    # No `valid` mask needed: real targets are < V, padded columns are >= V,
    # and padded token rows get tgt = 0 (a valid column) -> never a false hit
    # on a padded column, never a NaN on a padded row.
    col_local = lax.broadcasted_iota(jnp.int32, logits.shape, 1)     # (TN, TV)
    tgt_rel = tgt_ref[...] - j * tv                                  # (TN, 1)
    hit = col_local == tgt_rel                                       # (TN, TV)
    t_sc[...] += jnp.sum(jnp.where(hit, logits, 0.0), axis=-1, keepdims=True)

    def online_update(tile):
        m_prev = m_sc[...]
        m_new = jnp.maximum(m_prev, jnp.max(tile, axis=-1, keepdims=True))
        alpha = jnp.exp(m_prev - m_new)
        p = jnp.exp(tile - m_new)
        l_sc[...] = alpha * l_sc[...] + jnp.sum(p, axis=-1, keepdims=True)
        m_sc[...] = m_new

    if v_pad == v_actual:
        # Common production case: no vocab padding -> no mask pass at all.
        online_update(logits)
    else:
        # Only the last vocab tile contains padded columns; interior tiles
        # skip the compare+select entirely.
        @pl.when(j != nj - 1)
        def _():
            online_update(logits)

        @pl.when(j == nj - 1)
        def _():
            n_valid = v_actual - (v_pad - tv)   # >= 1 by construction
            masked = jnp.where(col_local < n_valid, logits, _NEG_LARGE)
            online_update(masked)

    @pl.when(j == nj - 1)
    def _():
        # per-token NLL = logsumexp(logits) - target_logit
        nll_ref[...] = (m_sc[...] + jnp.log(l_sc[...])) - t_sc[...]


def _round_up(a, b):
    return (a + b - 1) // b * b


def zero_layer_forward(x, targets, we, wu_w, *, tn=512, tv=1024):
    """ZeroLayerTransformer forward.

    x, targets : [B, T] int32 token ids (targets assumed < vocab_size)
    we         : [V, D] embedding table   (nn.Embedding(vocab_size, n_embd).weight)
    wu_w       : [V, D] unembedding weight (nn.Linear(n_embd, vocab_size, bias=False).weight)
    Returns (logits [B, T, V] bf16, loss scalar f32).
    """
    B, T = x.shape
    V, D = we.shape
    N = B * T

    # Tile sizes (clamped for small test shapes; multiples of (8, 128) otherwise).
    # NOTE(v7x): with realistic N, tn=512 keeps grid[0] >= 2 so the "parallel"
    # token axis still shards across both TensorCores.
    TN = min(tn, _round_up(N, 8))
    TV = min(tv, _round_up(V, 128))
    N_pad = _round_up(N, TN)
    V_pad = _round_up(V, TV)
    D_pad = _round_up(D, 128)
    # Online-softmax invariant: the last vocab tile must have >= 1 valid column.
    assert V_pad - V < TV

    # Embedding gather in the wrapper (free XLA gather). Cast the table (VxD)
    # once instead of the gathered activations (NxD); skip casts already done.
    we_b = we if we.dtype == jnp.bfloat16 else we.astype(jnp.bfloat16)
    wu = wu_w if wu_w.dtype == jnp.bfloat16 else wu_w.astype(jnp.bfloat16)
    emb = we_b[x.reshape(N)]                              # [N, D] bf16
    tgt = targets.reshape(N, 1).astype(jnp.int32)         # [N, 1]

    # Pad only when actually required (common case: no pads at all).
    if (N_pad, D_pad) != (N, D):
        emb = jnp.pad(emb, ((0, N_pad - N), (0, D_pad - D)))
    if (V_pad, D_pad) != (V, D):
        wu = jnp.pad(wu, ((0, V_pad - V), (0, D_pad - D)))
    if N_pad != N:
        tgt = jnp.pad(tgt, ((0, N_pad - N), (0, 0)))

    grid = (N_pad // TN, V_pad // TV)
    kernel = functools.partial(_zero_layer_kernel, v_actual=V, v_pad=V_pad, tv=TV)

    cost = pl.CostEstimate(
        flops=2 * N_pad * D_pad * V_pad,
        transcendentals=N_pad * V_pad,
        bytes_accessed=(N_pad * D_pad * 2                 # emb read (bf16)
                        + grid[0] * V_pad * D_pad * 2     # wu re-streamed per token tile
                        + N_pad * V_pad * 2               # logits write (bf16)
                        + N_pad * 8),                     # targets + nll
    )

    logits_p, nll_p = pl.pallas_call(
        kernel,
        out_shape=(
            jax.ShapeDtypeStruct((N_pad, V_pad), jnp.bfloat16),   # bf16 logits
            jax.ShapeDtypeStruct((N_pad, 1), jnp.float32),        # per-token NLL
        ),
        grid_spec=pltpu.PrefetchScalarGridSpec(
            num_scalar_prefetch=0,
            grid=grid,
            in_specs=[
                pl.BlockSpec((TN, D_pad), lambda i, j: (i, 0)),   # emb tile
                pl.BlockSpec((TV, D_pad), lambda i, j: (j, 0)),   # wu_w tile (rows, NT dot)
                pl.BlockSpec((TN, 1), lambda i, j: (i, 0)),       # target ids
            ],
            out_specs=(
                pl.BlockSpec((TN, TV), lambda i, j: (i, j)),      # logits (lane-dense)
                pl.BlockSpec((TN, 1), lambda i, j: (i, 0)),       # per-token NLL
            ),
            scratch_shapes=[
                pltpu.VMEM((TN, 1), jnp.float32),                 # running max
                pltpu.VMEM((TN, 1), jnp.float32),                 # running sum
                pltpu.VMEM((TN, 1), jnp.float32),                 # target logit
            ],
        ),
        compiler_params=pltpu.CompilerParams(
            dimension_semantics=("parallel", "arbitrary"),
            vmem_limit_bytes=32 * 1024 * 1024,
        ),
        cost_estimate=cost,
    )(emb, wu, tgt)

    logits = logits_p[:N, :V].reshape(B, T, V)
    loss = jnp.mean(nll_p[:N, 0])
    return logits, loss


def _reference_forward(x, targets, we, wu_w):
    emb = we[x]                                    # [B, T, D]
    logits = jnp.einsum("btd,vd->btv", emb, wu_w)  # [B, T, V]
    logp = jax.nn.log_softmax(logits, axis=-1)
    nll = -jnp.take_along_axis(logp, targets[..., None], axis=-1)
    return logits, jnp.mean(nll)


if __name__ == "__main__":
    # Small deterministic config consistent with the module (char-level vocab, n_embd=128).
    B, T = 2, 8
    vocab_size, n_embd = 65, 128

    key = jax.random.PRNGKey(0)
    k_x, k_t, k_we, k_wu = jax.random.split(key, 4)

    x = jax.random.randint(k_x, (B, T), 0, vocab_size, dtype=jnp.int32)
    targets = jax.random.randint(k_t, (B, T), 0, vocab_size, dtype=jnp.int32)

    we = jax.random.normal(k_we, (vocab_size, n_embd), dtype=jnp.float32)
    wu_w = 0.02 * jax.random.normal(k_wu, (vocab_size, n_embd), dtype=jnp.float32)

    logits, loss = jax.jit(zero_layer_forward)(x, targets, we, wu_w)
    logits = jax.block_until_ready(logits)
    loss = jax.block_until_ready(loss)

    # Sanity check against a pure-JAX f32 reference (bf16 operands / bf16 logits
    # output -> loose tolerance).
    ref_logits, ref_loss = _reference_forward(x, targets, we, wu_w)
    assert jnp.allclose(logits.astype(jnp.float32), ref_logits, atol=5e-2, rtol=5e-2), \
        float(jnp.max(jnp.abs(logits.astype(jnp.float32) - ref_logits)))
    assert jnp.allclose(loss, ref_loss, atol=2e-2, rtol=2e-2), \
        (float(loss), float(ref_loss))

    print("KERNEL_OK")
</pallas_src>

<mosaic_0001>
module attributes {stable_mosaic.version = 11 : i64} {
  func.func @_zero_layer_kernel(%arg0: i32, %arg1: i32, %arg2: memref<16x128xbf16, #tpu.memory_space<vmem>>, %arg3: memref<128x128xbf16, #tpu.memory_space<vmem>>, %arg4: memref<16x1xi32, #tpu.memory_space<vmem>>, %arg5: memref<16x128xbf16, #tpu.memory_space<vmem>>, %arg6: memref<16x1xf32, #tpu.memory_space<vmem>>, %arg7: memref<16x1xf32, #tpu.memory_space<vmem>>, %arg8: memref<16x1xf32, #tpu.memory_space<vmem>>, %arg9: memref<16x1xf32, #tpu.memory_space<vmem>>) attributes {dimension_semantics = [#tpu.dimension_semantics<parallel>, #tpu.dimension_semantics<arbitrary>], iteration_bounds = array<i64: 1, 1>, scalar_prefetch = 0 : i64, scratch_operands = 3 : i64, tpu.core_type = #tpu.core_type<tc>, window_params = [{transform_indices = @transform_0, window_bounds = array<i64: 16, 128>}, {transform_indices = @transform_1, window_bounds = array<i64: 128, 128>}, {transform_indices = @transform_2, window_bounds = array<i64: 16, 1>}, {transform_indices = @transform_3, window_bounds = array<i64: 16, 128>}, {transform_indices = @transform_4, window_bounds = array<i64: 16, 1>}]} {
    %c0_i32 = arith.constant 0 : i32
    %0 = arith.cmpi eq, %arg1, %c0_i32 : i32
    %1 = arith.extui %0 : i1 to i32
    %c0_i32_0 = arith.constant 0 : i32
    %2 = arith.cmpi ne, %1, %c0_i32_0 : i32
    scf.if %2 {
      %cst_20 = arith.constant -1.000000e+30 : f32
      %31 = vector.broadcast %cst_20 : f32 to vector<16x1xf32>
      %c0_21 = arith.constant 0 : index
      %c0_22 = arith.constant 0 : index
      %32 = vector.load %arg7[%c0_21, %c0_22] : memref<16x1xf32, #tpu.memory_space<vmem>>, vector<16x1xf32>
      tpu.vector_store %arg7[%c0_21, %c0_22], %31 {strides = array<i32>} : memref<16x1xf32, #tpu.memory_space<vmem>>, vector<16x1xf32>,
      %cst_23 = arith.constant 0.000000e+00 : f32
      %33 = vector.broadcast %cst_23 : f32 to vector<16x1xf32>
      %c0_24 = arith.constant 0 : index
      %c0_25 = arith.constant 0 : index
      %34 = vector.load %arg8[%c0_24, %c0_25] : memref<16x1xf32, #tpu.memory_space<vmem>>, vector<16x1xf32>
      tpu.vector_store %arg8[%c0_24, %c0_25], %33 {strides = array<i32>} : memref<16x1xf32, #tpu.memory_space<vmem>>, vector<16x1xf32>,
      %cst_26 = arith.constant 0.000000e+00 : f32
      %35 = vector.broadcast %cst_26 : f32 to vector<16x1xf32>
      %c0_27 = arith.constant 0 : index
      %c0_28 = arith.constant 0 : index
      %36 = vector.load %arg9[%c0_27, %c0_28] : memref<16x1xf32, #tpu.memory_space<vmem>>, vector<16x1xf32>
      tpu.vector_store %arg9[%c0_27, %c0_28], %35 {strides = array<i32>} : memref<16x1xf32, #tpu.memory_space<vmem>>, vector<16x1xf32>,
    } else {
    }
    %c0 = arith.constant 0 : index
    %c0_1 = arith.constant 0 : index
    %3 = vector.load %arg2[%c0, %c0_1] : memref<16x128xbf16, #tpu.memory_space<vmem>>, vector<16x128xbf16>
    %c0_2 = arith.constant 0 : index
    %c0_3 = arith.constant 0 : index
    %4 = vector.load %arg3[%c0_2, %c0_3] : memref<128x128xbf16, #tpu.memory_space<vmem>>, vector<128x128xbf16>
    %cst = arith.constant dense<0.000000e+00> : vector<16x128xf32>
    %5 = tpu.matmul %3, %4, %cst {dimension_numbers = #tpu.dot_dimension_numbers<[1], [1], [0], [0], [0, 0, 1, 0], [], []>} : vector<16x128xbf16>, vector<128x128xbf16>, vector<16x128xf32> -> vector<16x128xf32>
    %6 = arith.truncf %5 : vector<16x128xf32> to vector<16x128xbf16>
    %c0_4 = arith.constant 0 : index
    %c0_5 = arith.constant 0 : index
    %7 = vector.load %arg5[%c0_4, %c0_5] : memref<16x128xbf16, #tpu.memory_space<vmem>>, vector<16x128xbf16>
    tpu.vector_store %arg5[%c0_4, %c0_5], %6 {strides = array<i32>} : memref<16x128xbf16, #tpu.memory_space<vmem>>, vector<16x128xbf16>,
    %8 = tpu.iota {dimensions = array<i32: 1>} : vector<16x128xi32>
    %c0_6 = arith.constant 0 : index
    %c0_7 = arith.constant 0 : index
    %9 = vector.load %arg4[%c0_6, %c0_7] : memref<16x1xi32, #tpu.memory_space<vmem>>, vector<16x1xi32>
    %c128_i32 = arith.constant 128 : i32
    %10 = arith.muli %arg1, %c128_i32 : i32
    %11 = vector.broadcast %10 : i32 to vector<16x1xi32>
    %12 = arith.subi %9, %11 : vector<16x1xi32>
    %13 = vector.broadcast %12 : vector<16x1xi32> to vector<16x128xi32>
    %14 = arith.cmpi eq, %8, %13 : vector<16x128xi32>
    %c0_8 = arith.constant 0 : index
    %c0_9 = arith.constant 0 : index
    %15 = vector.load %arg9[%c0_8, %c0_9] : memref<16x1xf32, #tpu.memory_space<vmem>>, vector<16x1xf32>
    %cst_10 = arith.constant 0.000000e+00 : f32
    %16 = vector.broadcast %cst_10 : f32 to vector<16x128xf32>
    %17 = arith.select %14, %5, %16 : vector<16x128xi1>, vector<16x128xf32>
    %cst_11 = arith.constant dense<0.000000e+00> : vector<16xf32>
    %18 = vector.multi_reduction <add>, %17, %cst_11 [1] : vector<16x128xf32> to vector<16xf32>
    %19 = vector.shape_cast %18 : vector<16xf32> to vector<16x1xf32>
    %20 = arith.addf %15, %19 : vector<16x1xf32>
    %c0_12 = arith.constant 0 : index
    %c0_13 = arith.constant 0 : index
    %21 = vector.load %arg9[%c0_12, %c0_13] : memref<16x1xf32, #tpu.memory_space<vmem>>, vector<16x1xf32>
    tpu.vector_store %arg9[%c0_12, %c0_13], %20 {strides = array<i32>} : memref<16x1xf32, #tpu.memory_space<vmem>>, vector<16x1xf32>,
    %c0_i32_14 = arith.constant 0 : i32
    %22 = arith.cmpi ne, %arg1, %c0_i32_14 : i32
    %23 = arith.extui %22 : i1 to i32
    %c0_i32_15 = arith.constant 0 : i32
    %24 = arith.cmpi ne, %23, %c0_i32_15 : i32
    scf.if %24 {
      %c0_20 = arith.constant 0 : index
      %c0_21 = arith.constant 0 : index
      %31 = vector.load %arg7[%c0_20, %c0_21] : memref<16x1xf32, #tpu.memory_space<vmem>>, vector<16x1xf32>
      %cst_22 = arith.constant dense<0xFF800000> : vector<16xf32>
      %32 = vector.multi_reduction <maximumf>, %5, %cst_22 [1] : vector<16x128xf32> to vector<16xf32>
      %33 = vector.shape_cast %32 : vector<16xf32> to vector<16x1xf32>
      %34 = arith.maximumf %31, %33 : vector<16x1xf32>
      %35 = arith.subf %31, %34 : vector<16x1xf32>
      %36 = math.exp %35 : vector<16x1xf32>
      %37 = vector.broadcast %34 : vector<16x1xf32> to vector<16x128xf32>
      %38 = arith.subf %5, %37 : vector<16x128xf32>
      %39 = math.exp %38 : vector<16x128xf32>
      %c0_23 = arith.constant 0 : index
      %c0_24 = arith.constant 0 : index
      %40 = vector.load %arg8[%c0_23, %c0_24] : memref<16x1xf32, #tpu.memory_space<vmem>>, vector<16x1xf32>
      %41 = arith.mulf %36, %40 : vector<16x1xf32>
      %cst_25 = arith.constant dense<0.000000e+00> : vector<16xf32>
      %42 = vector.multi_reduction <add>, %39, %cst_25 [1] : vector<16x128xf32> to vector<16xf32>
      %43 = vector.shape_cast %42 : vector<16xf32> to vector<16x1xf32>
      %44 = arith.addf %41, %43 : vector<16x1xf32>
      %c0_26 = arith.constant 0 : index
      %c0_27 = arith.constant 0 : index
      %45 = vector.load %arg8[%c0_26, %c0_27] : memref<16x1xf32, #tpu.memory_space<vmem>>, vector<16x1xf32>
      tpu.vector_store %arg8[%c0_26, %c0_27], %44 {strides = array<i32>} : memref<16x1xf32, #tpu.memory_space<vmem>>, vector<16x1xf32>,
      %c0_28 = arith.constant 0 : index
      %c0_29 = arith.constant 0 : index
      %46 = vector.load %arg7[%c0_28, %c0_29] : memref<16x1xf32, #tpu.memory_space<vmem>>, vector<16x1xf32>
      tpu.vector_store %arg7[%c0_28, %c0_29], %34 {strides = array<i32>} : memref<16x1xf32, #tpu.memory_space<vmem>>, vector<16x1xf32>,
    } else {
    }
    %c0_i32_16 = arith.constant 0 : i32
    %25 = arith.cmpi eq, %arg1, %c0_i32_16 : i32
    %26 = arith.extui %25 : i1 to i32
    %c0_i32_17 = arith.constant 0 : i32
    %27 = arith.cmpi ne, %26, %c0_i32_17 : i32
    scf.if %27 {
      %c65_i32 = arith.constant 65 : i32
      %31 = vector.broadcast %c65_i32 : i32 to vector<16x128xi32>
      %32 = arith.cmpi slt, %8, %31 : vector<16x128xi32>
      %cst_20 = arith.constant -1.000000e+30 : f32
      %33 = vector.broadcast %cst_20 : f32 to vector<16x128xf32>
      %34 = arith.select %32, %5, %33 : vector<16x128xi1>, vector<16x128xf32>
      %c0_21 = arith.constant 0 : index
      %c0_22 = arith.constant 0 : index
      %35 = vector.load %arg7[%c0_21, %c0_22] : memref<16x1xf32, #tpu.memory_space<vmem>>, vector<16x1xf32>
      %cst_23 = arith.constant dense<0xFF800000> : vector<16xf32>
      %36 = vector.multi_reduction <maximumf>, %34, %cst_23 [1] : vector<16x128xf32> to vector<16xf32>
      %37 = vector.shape_cast %36 : vector<16xf32> to vector<16x1xf32>
      %38 = arith.maximumf %35, %37 : vector<16x1xf32>
      %39 = arith.subf %35, %38 : vector<16x1xf32>
      %40 = math.exp %39 : vector<16x1xf32>
      %41 = vector.broadcast %38 : vector<16x1xf32> to vector<16x128xf32>
      %42 = arith.subf %34, %41 : vector<16x128xf32>
      %43 = math.exp %42 : vector<16x128xf32>
      %c0_24 = arith.constant 0 : index
      %c0_25 = arith.constant 0 : index
      %44 = vector.load %arg8[%c0_24, %c0_25] : memref<16x1xf32, #tpu.memory_space<vmem>>, vector<16x1xf32>
      %45 = arith.mulf %40, %44 : vector<16x1xf32>
      %cst_26 = arith.constant dense<0.000000e+00> : vector<16xf32>
      %46 = vector.multi_reduction <add>, %43, %cst_26 [1] : vector<16x128xf32> to vector<16xf32>
      %47 = vector.shape_cast %46 : vector<16xf32> to vector<16x1xf32>
      %48 = arith.addf %45, %47 : vector<16x1xf32>
      %c0_27 = arith.constant 0 : index
      %c0_28 = arith.constant 0 : index
      %49 = vector.load %arg8[%c0_27, %c0_28] : memref<16x1xf32, #tpu.memory_space<vmem>>, vector<16x1xf32>
      tpu.vector_store %arg8[%c0_27, %c0_28], %48 {strides = array<i32>} : memref<16x1xf32, #tpu.memory_space<vmem>>, vector<16x1xf32>,
      %c0_29 = arith.constant 0 : index
      %c0_30 = arith.constant 0 : index
      %50 = vector.load %arg7[%c0_29, %c0_30] : memref<16x1xf32, #tpu.memory_space<vmem>>, vector<16x1xf32>
      tpu.vector_store %arg7[%c0_29, %c0_30], %38 {strides = array<i32>} : memref<16x1xf32, #tpu.memory_space<vmem>>, vector<16x1xf32>,
    } else {
    }
    %c0_i32_18 = arith.constant 0 : i32
    %28 = arith.cmpi eq, %arg1, %c0_i32_18 : i32
    %29 = arith.extui %28 : i1 to i32
    %c0_i32_19 = arith.constant 0 : i32
    %30 = arith.cmpi ne, %29, %c0_i32_19 : i32
    scf.if %30 {
      %c0_20 = arith.constant 0 : index
      %c0_21 = arith.constant 0 : index
      %31 = vector.load %arg7[%c0_20, %c0_21] : memref<16x1xf32, #tpu.memory_space<vmem>>, vector<16x1xf32>
      %c0_22 = arith.constant 0 : index
      %c0_23 = arith.constant 0 : index
      %32 = vector.load %arg8[%c0_22, %c0_23] : memref<16x1xf32, #tpu.memory_space<vmem>>, vector<16x1xf32>
      %33 = math.log %32 : vector<16x1xf32>
      %34 = arith.addf %31, %33 : vector<16x1xf32>
      %c0_24 = arith.constant 0 : index
      %c0_25 = arith.constant 0 : index
      %35 = vector.load %arg9[%c0_24, %c0_25] : memref<16x1xf32, #tpu.memory_space<vmem>>, vector<16x1xf32>
      %36 = arith.subf %34, %35 : vector<16x1xf32>
      %c0_26 = arith.constant 0 : index
      %c0_27 = arith.constant 0 : index
      %37 = vector.load %arg6[%c0_26, %c0_27] : memref<16x1xf32, #tpu.memory_space<vmem>>, vector<16x1xf32>
      tpu.vector_store %arg6[%c0_26, %c0_27], %36 {strides = array<i32>} : memref<16x1xf32, #tpu.memory_space<vmem>>, vector<16x1xf32>,
    } else {
    }
    return
  }
  func.func @transform_0(%arg0: i32, %arg1: i32) -> (i32, i32) {
    %c0_i32 = arith.constant 0 : i32
    %c0_i32_0 = arith.constant 0 : i32
    return %arg0, %c0_i32 : i32, i32
  }
  func.func @transform_1(%arg0: i32, %arg1: i32) -> (i32, i32) {
    %c0_i32 = arith.constant 0 : i32
    %c0_i32_0 = arith.constant 0 : i32
    return %arg1, %c0_i32 : i32, i32
  }
  func.func @transform_2(%arg0: i32, %arg1: i32) -> (i32, i32) {
    %c0_i32 = arith.constant 0 : i32
    %c0_i32_0 = arith.constant 0 : i32
    return %arg0, %c0_i32 : i32, i32
  }
  func.func @transform_3(%arg0: i32, %arg1: i32) -> (i32, i32) {
    %c0_i32 = arith.constant 0 : i32
    return %arg0, %arg1 : i32, i32
  }
  func.func @transform_4(%arg0: i32, %arg1: i32) -> (i32, i32) {
    %c0_i32 = arith.constant 0 : i32
    %c0_i32_0 = arith.constant 0 : i32
    return %arg0, %c0_i32 : i32, i32
  }
}

</mosaic_0001>

<llo_original>
// kernel: zero_layer_forward.1
$region0: #{zero_layer_forward.1}
  #allocation0 [shape = 'u32[]', space=smem, size = 0x4, offset = 0x4, fixed_abs, tag = 'smem constant byte address 0x4 - core index']
  #allocation1 [shape = 'u32[72,128]{1,0:T(1,128)}', space=vmem, size = 0x9000, scoped, tag = 'internal scratch']
  #allocation2 [shape = 'f32[16,1]{1,0:T(8,128)}', space=vmem, size = 0x2000, scoped, tag = 'scratch operand']
  #allocation3 [shape = 'f32[16,1]{1,0:T(8,128)}', space=vmem, size = 0x2000, scoped, tag = 'scratch operand']
  #allocation4 [shape = 'f32[16,1]{1,0:T(8,128)}', space=vmem, size = 0x2000, scoped, tag = 'scratch operand']
  %s0 = inlined_call_operand.vmem [shape: bf16[16,128], index: 0, kind: input, shape index: {}]
  %s1 = inlined_call_operand.vmem [shape: bf16[128,128], index: 1, kind: input, shape index: {}]
  %s2 = inlined_call_operand.vmem [shape: s32[16,1], index: 2, kind: input, shape index: {}]
  %s3 = inlined_call_operand.vmem [shape: bf16[16,128], index: 3, kind: output, shape index: {0}]
  %s4 = inlined_call_operand.vmem [shape: f32[16,1], index: 4, kind: output, shape index: {1}]
  %5 = xla_tuple %s3, %s4
  %s6 = sld [smem:[#allocation0]]
  $region42: #{zero_layer_forward.1} parent=0
    _
  %s8 = ssub.s32 1, %s6
  %s9 = scalar_select 0, %s8, %s6
  // Predicated region
  $region2: #{zero_layer_forward.1} parent=0 // pred_check
    _
  $region3: #{zero_layer_forward.1} parent=0 // pred_check_branch
    %11 = sbr.rel (0) target = $region5
  $region4: #{zero_layer_forward.1} parent=0 // pred_region
    _
  $region5: #{zero_layer_forward.1} parent=0 // pred_fallthru
    _
  // Predicated region
  $region6: #{zero_layer_forward.1} parent=0 // pred_check
    _
  $region7: #{zero_layer_forward.1} parent=0 // pred_check_branch
    %13 = sbr.rel (0) target = $region9
  $region8: #{zero_layer_forward.1} parent=0 // pred_region
    _
  $region9: #{zero_layer_forward.1} parent=0 // pred_fallthru
    _
  // Predicated region
  $region10: #{zero_layer_forward.1} parent=0 // pred_check
    _
  $region11: #{zero_layer_forward.1} parent=0 // pred_check_branch
    %15 = sbr.rel (0) target = $region13
  $region12: #{zero_layer_forward.1} parent=0 // pred_region
    _
  $region13: #{zero_layer_forward.1} parent=0 // pred_fallthru
    _
  %p16 = scmp.eq.s32.totalorder 0, 0
  // Predicated region
  $region14: #{zero_layer_forward.1} parent=0 // pred_check
    %p17 = pneg %p16
  $region15: #{zero_layer_forward.1} parent=0 // pred_check_branch
    %19 = sbr.rel (%p17) target = $region17
  $region16: #{zero_layer_forward.1} parent=0 // pred_region
    %vm20 = vcmask 7168
    %21 = vst.msk [vmem:[#allocation2] sm:$0xff] %vm20, -1e+30
    %22 = vst.msk [vmem:[#allocation2 + $0x8] sm:$0xff] %vm20, -1e+30
    %23 = vst.msk [vmem:[#allocation3] sm:$0xff] %vm20, 0.0
    %24 = vst.msk [vmem:[#allocation3 + $0x8] sm:$0xff] %vm20, 0.0
    %25 = vst.msk [vmem:[#allocation4] sm:$0xff] %vm20, 0.0
    %26 = vst.msk [vmem:[#allocation4 + $0x8] sm:$0xff] %vm20, 0.0
  $region17: #{zero_layer_forward.1} parent=0 // pred_fallthru
    _
  %v27 = vld [vmem:[%s0] sm:$0xf]
  %v28 = vld [vmem:[%s0 + $0x4] sm:$0xf]
  %v29 = vld [vmem:[%s1] sm:$0xf]
  %v30 = vld [vmem:[%s1 + $0x4] sm:$0xf]
  %v31 = vld [vmem:[%s1 + $0x8] sm:$0xf]
  %v32 = vld [vmem:[%s1 + $0xc] sm:$0xf]
  %v33 = vld [vmem:[%s1 + $0x10] sm:$0xf]
  %v34 = vld [vmem:[%s1 + $0x14] sm:$0xf]
  %v35 = vld [vmem:[%s1 + $0x18] sm:$0xf]
  %v36 = vld [vmem:[%s1 + $0x1c] sm:$0xf]
  %v37 = vld [vmem:[%s1 + $0x20] sm:$0xf]
  %v38 = vld [vmem:[%s1 + $0x24] sm:$0xf]
  %v39 = vld [vmem:[%s1 + $0x28] sm:$0xf]
  %v40 = vld [vmem:[%s1 + $0x2c] sm:$0xf]
  %v41 = vld [vmem:[%s1 + $0x30] sm:$0xf]
  %v42 = vld [vmem:[%s1 + $0x34] sm:$0xf]
  %v43 = vld [vmem:[%s1 + $0x38] sm:$0xf]
  %v44 = vld [vmem:[%s1 + $0x3c] sm:$0xf]
  %v47 = vunpack.c.l.b16 %v27
  %v48 = vunpack.c.l.b16 %v28
  %v49 = vpack.c.b16 %v48, %v47
  %v67 = vunpack.c.l.b16 %v29
  %v68 = vunpack.c.l.b16 %v30
  %v69 = vunpack.c.l.b16 %v31
  %v70 = vunpack.c.l.b16 %v32
  %v71 = vunpack.c.l.b16 %v33
  %v72 = vunpack.c.l.b16 %v34
  %v73 = vunpack.c.l.b16 %v35
  %v74 = vunpack.c.l.b16 %v36
  %v75 = vunpack.c.l.b16 %v37
  %v76 = vunpack.c.l.b16 %v38
  %v77 = vunpack.c.l.b16 %v39
  %v78 = vunpack.c.l.b16 %v40
  %v79 = vunpack.c.l.b16 %v41
  %v80 = vunpack.c.l.b16 %v42
  %v81 = vunpack.c.l.b16 %v43
  %v82 = vunpack.c.l.b16 %v44
  %v83 = vpack.c.b16 %v68, %v67
  %v84 = vpack.c.b16 %v70, %v69
  %v85 = vpack.c.b16 %v72, %v71
  %v86 = vpack.c.b16 %v74, %v73
  %v87 = vpack.c.b16 %v76, %v75
  %v88 = vpack.c.b16 %v78, %v77
  %v89 = vpack.c.b16 %v80, %v79
  %v90 = vpack.c.b16 %v82, %v81
  %99 = vmatpush.bf16.xpose.msra.mxu0 %v90
  %100 = vmatpush.bf16.xpose.msra.mxu0 %v89
  %101 = vmatpush.bf16.xpose.msra.mxu0 %v88
  %102 = vmatpush.bf16.xpose.msra.mxu0 %v87
  %103 = vmatpush.bf16.xpose.msra.mxu0 %v86
  %104 = vmatpush.bf16.xpose.msra.mxu0 %v85
  %105 = vmatpush.bf16.xpose.msra.mxu0 %v84
  %106 = vmatpush.bf16.xpose.msra.mxu0 %v83
  %107 = vmatmul.bf16.gmra.mxu0 %v49
  %v108 = vpop.f32.mrf.mxu0
  %v109 = vadd.f32 0.0, %v108
  %v110 = vpop.f32.mrf.mxu0
  %v111 = vadd.f32 0.0, %v110
  %112 = vdwg.mxu0
  %v113 = vpack.c.bf16 %v109, %v109
  %v114 = vpack.c.bf16 %v111, %v111
  %115 = vst [vmem:[%s3] sm:$0xf] %v113
  %116 = vst [vmem:[%s3 + $0x4] sm:$0xf] %v114
  %v117 = vlaneseq
  %v118 = vand.u32 %v117, 127
  %v119 = vld [vmem:[%s2] sm:$0xff]
  %v120 = vld [vmem:[%s2 + $0x8] sm:$0xff]
  %s121 = smul.u32 0, 128
  %v122 = vstv %s121
  %v123 = vsub.s32 %v119, %v122
  %v124 = vsub.s32 %v120, %v122
  %125 = vset.pattern.permute.xlu0 0
  %126 = vperm.xlu0 %125, %v123
  %v127 = vpop.permute.xlu0 %126
  %128 = vset.pattern.permute.xlu0 0
  %129 = vperm.xlu0 %128, %v124
  %v130 = vpop.permute.xlu0 %129
  %vm131 = vcmp.eq.s32.totalorder %v118, %v127
  %vm132 = vcmp.eq.s32.totalorder %v118, %v130
  %v133 = vld [vmem:[#allocation4] sm:$0xff]
  %v134 = vld [vmem:[#allocation4 + $0x8] sm:$0xff]
  %v135 = vsel %vm131, %v109, 0.0
  %v136 = vsel %vm132, %v111, 0.0
  %137 = vadd.xlane.f32.xlu0 %v135
  %v138 = vpop.xlane.xlu0 %137
  %139 = vadd.xlane.f32.xlu0 %v136
  %v140 = vpop.xlane.xlu0 %139
  %v141 = vadd.f32 %v133, %v138
  %v142 = vadd.f32 %v134, %v140
  %vm143 = vcmask 7168
  %144 = vst.msk [vmem:[#allocation4] sm:$0xff] %vm143, %v141
  %145 = vst.msk [vmem:[#allocation4 + $0x8] sm:$0xff] %vm143, %v142
  %p146 = scmp.ne.s32.totalorder 0, 0
  // Predicated region
  $region18: #{zero_layer_forward.1} parent=0 // pred_check
    %p147 = pneg %p146
  $region19: #{zero_layer_forward.1} parent=0 // pred_check_branch
    %149 = sbr.rel (%p147) target = $region21
  $region20: #{zero_layer_forward.1} parent=0 // pred_region
    %v150 = vld [vmem:[#allocation2] sm:$0xff]
    %v151 = vld [vmem:[#allocation2 + $0x8] sm:$0xff]
    %152 = vmax.xlane.f32.xlu0 %v109
    %v153 = vpop.xlane.xlu0 %152
    %154 = vmax.xlane.f32.xlu0 %v111
    %v155 = vpop.xlane.xlu0 %154
    %v156 = vmax.f32 %v150, %v153
    %v157 = vmax.f32 %v151, %v155
    %v158 = vsub.f32 %v150, %v156
    %v159 = vsub.f32 %v151, %v157
    %v160 = vmul.f32 %v158, 1.442695
    %v161 = vpow.pop %v160
    %v162 = vmul.f32 %v159, 1.442695
    %v163 = vpow.pop %v162
    %165 = vset.pattern.permute.xlu0 0
    %166 = vperm.xlu0 %165, %v156
    %v167 = vpop.permute.xlu0 %166
    %170 = vset.pattern.permute.xlu0 0
    %171 = vperm.xlu0 %170, %v157
    %v172 = vpop.permute.xlu0 %171
    %v174 = vsub.f32 %v109, %v167
    %v175 = vsub.f32 %v111, %v172
    %v176 = vmul.f32 %v174, 1.442695
    %v177 = vpow.pop %v176
    %v178 = vmul.f32 %v175, 1.442695
    %v179 = vpow.pop %v178
    %v180 = vld [vmem:[#allocation3] sm:$0xff]
    %v181 = vld [vmem:[#allocation3 + $0x8] sm:$0xff]
    %v182 = vmul.f32 %v161, %v180
    %v183 = vmul.f32 %v163, %v181
    %184 = vadd.xlane.f32.xlu0 %v177
    %v185 = vpop.xlane.xlu0 %184
    %186 = vadd.xlane.f32.xlu0 %v179
    %v187 = vpop.xlane.xlu0 %186
    %v188 = vadd.f32 %v182, %v185
    %v189 = vadd.f32 %v183, %v187
    %190 = vst.msk [vmem:[#allocation3] sm:$0xff] %vm143, %v188
    %191 = vst.msk [vmem:[#allocation3 + $0x8] sm:$0xff] %vm143, %v189
    %192 = vst.msk [vmem:[#allocation2] sm:$0xff] %vm143, %v156
    %193 = vst.msk [vmem:[#allocation2 + $0x8] sm:$0xff] %vm143, %v157
  $region21: #{zero_layer_forward.1} parent=0 // pred_fallthru
    _
  // Predicated region
  $region22: #{zero_layer_forward.1} parent=0 // pred_check
    %p194 = pneg %p16
  $region23: #{zero_layer_forward.1} parent=0 // pred_check_branch
    %196 = sbr.rel (%p194) target = $region25
  $region24: #{zero_layer_forward.1} parent=0 // pred_region
    %vm197 = vcmp.lt.s32.totalorder %v118, 65
    %v198 = vsel %vm197, %v109, -1e+30
    %v199 = vsel %vm197, %v111, -1e+30
    %v200 = vld [vmem:[#allocation2] sm:$0xff]
    %v201 = vld [vmem:[#allocation2 + $0x8] sm:$0xff]
    %202 = vmax.xlane.f32.xlu0 %v198
    %v203 = vpop.xlane.xlu0 %202
    %204 = vmax.xlane.f32.xlu0 %v199
    %v205 = vpop.xlane.xlu0 %204
    %v206 = vmax.f32 %v200, %v203
    %v207 = vmax.f32 %v201, %v205
    %v208 = vsub.f32 %v200, %v206
    %v209 = vsub.f32 %v201, %v207
    %v210 = vmul.f32 %v208, 1.442695
    %v211 = vpow.pop %v210
    %v212 = vmul.f32 %v209, 1.442695
    %v213 = vpow.pop %v212
    %215 = vset.pattern.permute.xlu0 0
    %216 = vperm.xlu0 %215, %v206
    %v217 = vpop.permute.xlu0 %216
    %220 = vset.pattern.permute.xlu0 0
    %221 = vperm.xlu0 %220, %v207
    %v222 = vpop.permute.xlu0 %221
    %v224 = vsub.f32 %v198, %v217
    %v225 = vsub.f32 %v199, %v222
    %v226 = vmul.f32 %v224, 1.442695
    %v227 = vpow.pop %v226
    %v228 = vmul.f32 %v225, 1.442695
    %v229 = vpow.pop %v228
    %v230 = vld [vmem:[#allocation3] sm:$0xff]
    %v231 = vld [vmem:[#allocation3 + $0x8] sm:$0xff]
    %v232 = vmul.f32 %v211, %v230
    %v233 = vmul.f32 %v213, %v231
    %234 = vadd.xlane.f32.xlu0 %v227
    %v235 = vpop.xlane.xlu0 %234
    %236 = vadd.xlane.f32.xlu0 %v229
    %v237 = vpop.xlane.xlu0 %236
    %v238 = vadd.f32 %v232, %v235
    %v239 = vadd.f32 %v233, %v237
    %240 = vst.msk [vmem:[#allocation3] sm:$0xff] %vm143, %v238
    %241 = vst.msk [vmem:[#allocation3 + $0x8] sm:$0xff] %vm143, %v239
    %242 = vst.msk [vmem:[#allocation2] sm:$0xff] %vm143, %v206
    %243 = vst.msk [vmem:[#allocation2 + $0x8] sm:$0xff] %vm143, %v207
    %v244 = vld [vmem:[#allocation2] sm:$0xff]
    %v245 = vld [vmem:[#allocation2 + $0x8] sm:$0xff]
    %v246 = vld [vmem:[#allocation3] sm:$0xff]
    %v247 = vld [vmem:[#allocation3 + $0x8] sm:$0xff]
    %v248 = vlog2.pop %v246
    %v249 = vmul.f32 %v248, 0.6931472
    %v250 = vlog2.pop %v247
    %v251 = vmul.f32 %v250, 0.6931472
    %v252 = vadd.f32 %v244, %v249
    %v253 = vadd.f32 %v245, %v251
    %v254 = vld [vmem:[#allocation4] sm:$0xff]
    %v255 = vld [vmem:[#allocation4 + $0x8] sm:$0xff]
    %v256 = vsub.f32 %v252, %v254
    %v257 = vsub.f32 %v253, %v255
    %258 = vst.msk [vmem:[%s4] sm:$0xff] %vm143, %v256
    %259 = vst.msk [vmem:[%s4 + $0x8] sm:$0xff] %vm143, %v257
  $region25: #{zero_layer_forward.1} parent=0 // pred_fallthru
    _
  // Predicated region
  $region26: #{zero_layer_forward.1} parent=0 // pred_check
    _
  $region27: #{zero_layer_forward.1} parent=0 // pred_check_branch
    %261 = sbr.rel (0) target = $region29
  $region28: #{zero_layer_forward.1} parent=0 // pred_region
    _
  $region29: #{zero_layer_forward.1} parent=0 // pred_fallthru
    _
  // Predicated region
  $region30: #{zero_layer_forward.1} parent=0 // pred_check
    _
  $region31: #{zero_layer_forward.1} parent=0 // pred_check_branch
    %263 = sbr.rel (0) target = $region33
  $region32: #{zero_layer_forward.1} parent=0 // pred_region
    _
  $region33: #{zero_layer_forward.1} parent=0 // pred_fallthru
    _
  // Predicated region
  $region34: #{zero_layer_forward.1} parent=0 // pred_check
    _
  $region35: #{zero_layer_forward.1} parent=0 // pred_check_branch
    %265 = sbr.rel (0) target = $region37
  $region36: #{zero_layer_forward.1} parent=0 // pred_region
    _
  $region37: #{zero_layer_forward.1} parent=0 // pred_fallthru
    _
  // Predicated region
  $region38: #{zero_layer_forward.1} parent=0 // pred_check
    _
  $region39: #{zero_layer_forward.1} parent=0 // pred_check_branch
    %267 = sbr.rel (0) target = $region41
  $region40: #{zero_layer_forward.1} parent=0 // pred_region
    _
  $region41: #{zero_layer_forward.1} parent=0 // pred_fallthru
    _

</llo_original>
